<compile_context>
chip_gen: v7x
topology: tpu7x:2x2x1
jax: 0.10.0
libtpu: 0.0.40
codegen_flags: <defaults>
</compile_context>

<pallas_src>
import functools

import jax
import jax.numpy as jnp
import numpy as np
from jax import lax
from jax.experimental import pallas as pl
from jax.experimental.pallas import tpu as pltpu

EPS = 1e-5


# --------------------------- kernel helpers ---------------------------

def _shifted_taps(x, L):
    """Left/right conv taps of a (C, B*L) slab holding B whole length-L samples.

    left[:, l]  = x[:, l-1] (zero at each sample's first position)
    right[:, l] = x[:, l+1] (zero at each sample's last position)
    The rolls are circular; the per-sample edge masks zero exactly the
    positions that would otherwise see wrapped / cross-sample data.
    """
    BL = x.shape[-1]
    pos = lax.broadcasted_iota(jnp.int32, x.shape, 1) % L
    left = pltpu.roll(x, 1, 1)           # x[:, l-1] with wraparound
    right = pltpu.roll(x, BL - 1, 1)     # x[:, l+1] with wraparound
    left = jnp.where(pos == 0, 0.0, left)
    right = jnp.where(pos == L - 1, 0.0, right)
    return left, right


def _conv3(w_ref, left, mid, right, *, mxu_dtype):
    """k=3, pad=1 Conv1d on a (C, BL) slab.  w_ref is (Cout, 3*Cin) tap-major."""
    f32 = jnp.float32
    C = mid.shape[0]
    if C >= 256:
        # Large C: three accumulating (C,C)@(C,BL) matmuls on the taps.  K=C
        # already saturates the MXU contraction depth, and this avoids the
        # (3C, BL) sublane-concat temporary.
        y = jnp.dot(w_ref[:, 0:C], left.astype(mxu_dtype),
                    preferred_element_type=f32)
        y += jnp.dot(w_ref[:, C:2 * C], mid.astype(mxu_dtype),
                     preferred_element_type=f32)
        y += jnp.dot(w_ref[:, 2 * C:3 * C], right.astype(mxu_dtype),
                     preferred_element_type=f32)
        return y
    # Small C: one fused (C,3C)@(3C,BL) im2col matmul fills the MXU better.
    taps = jnp.concatenate([left, mid, right], axis=0).astype(mxu_dtype)
    return jnp.dot(w_ref[...], taps, preferred_element_type=f32)


def _stat_pair(y):
    """Per-channel [sum, sum of squares] over the lane axis, packed as (C, 2)."""
    s = jnp.sum(y, axis=-1, keepdims=True)
    ss = jnp.sum(y * y, axis=-1, keepdims=True)
    return jnp.concatenate([s, ss], axis=-1)


# ------------------------------ kernels -------------------------------

def conv_stats_kernel(x_ref, w_ref, y_ref, stat_ref, *, L, mxu_dtype):
    """Stage 1: y1 = conv1(x) (bias-free) + per-chunk channel stats."""
    x = x_ref[...].astype(jnp.float32)                       # (C, BL)
    left, right = _shifted_taps(x, L)
    y = _conv3(w_ref, left, x, right, mxu_dtype=mxu_dtype)   # (C, BL) f32
    y_ref[...] = y.astype(y_ref.dtype)
    stat_ref[0] = _stat_pair(y)                              # (C, 2)


def bn_relu_conv_stats_kernel(y1_ref, sc_ref, sh_ref, w_ref,
                              y2_ref, stat_ref, *, L, mxu_dtype):
    """Stage 2: y2 = conv2(relu(scale1*y1 + shift1)) + per-chunk stats."""
    z = jnp.maximum(sc_ref[...] * y1_ref[...].astype(jnp.float32) + sh_ref[...],
                    0.0)                                      # (C, BL)
    left, right = _shifted_taps(z, L)
    y = _conv3(w_ref, left, z, right, mxu_dtype=mxu_dtype)
    y2_ref[...] = y.astype(y2_ref.dtype)
    stat_ref[0] = _stat_pair(y)


def bn_res_relu_kernel(y2_ref, x_ref, sc_ref, sh_ref, o_ref):
    """Stage 3: out = relu(scale2*y2 + shift2 + x)."""
    r = (sc_ref[...] * y2_ref[...].astype(jnp.float32) + sh_ref[...]
         + x_ref[...].astype(jnp.float32))
    o_ref[...] = jnp.maximum(r, 0.0).astype(o_ref.dtype)


# ------------------------------ wrapper --------------------------------

def _bn_affine(stats, gamma, beta, count):
    """Fold train-mode BatchNorm into per-channel scale/shift.

    stats: (G, C, 2) partial [sum, sumsq] of the *bias-free* conv output y.
    bn(y + b) = scale*(y - mean_y) + beta   (the conv bias cancels exactly).
    """
    tot = jnp.sum(stats, axis=0)                       # (C, 2) f32
    mean = tot[:, 0] / count
    # E[y^2]-E[y]^2 in f32 with a clamp guard; fine for conv activations.
    var = jnp.maximum(tot[:, 1] / count - mean * mean, 0.0)
    scale = gamma.astype(jnp.float32) * lax.rsqrt(var + EPS)
    shift = beta.astype(jnp.float32) - scale * mean
    return scale[:, None], shift[:, None]              # (C, 1) each


def _vmem_limit_bytes():
    # ~3/4 of physical VMEM: ~96 MiB on v5e/v6e (128 MiB), ~48 MiB on v7x (64 MiB).
    try:
        cap = int(pltpu.get_tpu_info().vmem_capacity_bytes)
    except Exception:
        cap = 64 * 1024 * 1024
    return int(min(cap * 3 // 4, 96 * 1024 * 1024))


def _samples_per_step(N, L, target_lanes=512, max_lanes=4096):
    """Samples per grid step.  The lane chunk B*L must be a whole number of
    samples and a multiple of 128 (or the full N*L) so stores are dense and
    the conv's zero padding stays exact at chunk edges; aim for >=512 lanes
    per step to amortize the ~0.35us/step grid overhead."""
    # TODO(synk): lane chunks must cover whole samples; ragged L (no divisor
    # B with (B*L) % 128 == 0) currently falls back to one full-slab program
    # instead of halo DMAs.
    divisors = [b for b in range(1, N + 1) if N % b == 0]
    ok = [b for b in divisors if (b * L) % 128 == 0 and b * L <= max_lanes]
    if not ok:
        ok = [b for b in divisors if (b * L) % 128 == 0]
    if not ok:
        return N
    for b in ok:
        if b * L >= target_lanes:
            return b
    return ok[-1]


def basic_block(x, params, *, mxu_dtype=None, inter_dtype=None):
    """x: (N, C, L) channels-first.  params: (w1,b1,g1,be1,w2,b2,g2,be2).

    mxu_dtype:   dtype fed to the MXU (weights + taps).  Defaults to x.dtype;
                 pass jnp.bfloat16 on v6e/v7x for full MXU rate.
    inter_dtype: HBM storage dtype of the y1/y2 intermediates (default x.dtype).
    """
    N, C, L = x.shape
    w1, b1, g1, be1, w2, b2, g2, be2 = params
    del b1, b2                     # conv biases cancel under train-mode BN
    f32 = jnp.float32
    mxu_dtype = jnp.dtype(mxu_dtype) if mxu_dtype is not None else jnp.dtype(x.dtype)
    inter_dtype = jnp.dtype(inter_dtype) if inter_dtype is not None else jnp.dtype(x.dtype)

    # NCL -> channel-major slab (C, N*L): one XLA transpose in, one out
    # (layout plumbing outside the kernels); all kernel tiles are lane-dense 2-D.
    xt = jnp.transpose(x, (1, 0, 2)).reshape(C, N * L)

    # (Cout, Cin, 3) -> (Cout, 3*Cin) tap-major: [W_{k=0} | W_{k=1} | W_{k=2}].
    w1i = jnp.transpose(w1, (0, 2, 1)).reshape(C, 3 * C).astype(mxu_dtype)
    w2i = jnp.transpose(w2, (0, 2, 1)).reshape(C, 3 * C).astype(mxu_dtype)

    B = _samples_per_step(N, L)    # whole samples per grid step
    G = N // B                     # grid size
    BL = B * L                     # lane chunk

    cparams = pltpu.CompilerParams(
        dimension_semantics=("parallel",),     # batch chunks shard across TCs (v7x)
        vmem_limit_bytes=_vmem_limit_bytes(),
    )

    act_spec = pl.BlockSpec((C, BL), lambda g: (0, g))
    w_spec = pl.BlockSpec((C, 3 * C), lambda g: (0, 0))    # resident across grid
    vec_spec = pl.BlockSpec((C, 1), lambda g: (0, 0))
    stat_spec = pl.BlockSpec((1, C, 2), lambda g: (g, 0, 0))

    inter_shape = jax.ShapeDtypeStruct((C, N * L), inter_dtype)
    stat_shape = jax.ShapeDtypeStruct((G, C, 2), f32)
    count = N * L

    # -------- stage 1: conv1 + per-chunk channel stats --------
    y1, st1 = pl.pallas_call(
        functools.partial(conv_stats_kernel, L=L, mxu_dtype=mxu_dtype),
        grid=(G,),
        in_specs=[act_spec, w_spec],
        out_specs=(act_spec, stat_spec),
        out_shape=(inter_shape, stat_shape),
        compiler_params=cparams,
    )(xt, w1i)
    scale1, shift1 = _bn_affine(st1, g1, be1, count)

    # -------- stage 2: bn1-apply + relu + conv2 + per-chunk stats --------
    y2, st2 = pl.pallas_call(
        functools.partial(bn_relu_conv_stats_kernel, L=L, mxu_dtype=mxu_dtype),
        grid=(G,),
        in_specs=[act_spec, vec_spec, vec_spec, w_spec],
        out_specs=(act_spec, stat_spec),
        out_shape=(inter_shape, stat_shape),
        compiler_params=cparams,
    )(y1, scale1, shift1, w2i)
    scale2, shift2 = _bn_affine(st2, g2, be2, count)

    # -------- stage 3: bn2-apply + residual + relu --------
    out_slab = pl.pallas_call(
        bn_res_relu_kernel,
        grid=(G,),
        in_specs=[act_spec, act_spec, vec_spec, vec_spec],
        out_specs=act_spec,
        out_shape=jax.ShapeDtypeStruct((C, N * L), x.dtype),
        compiler_params=cparams,
    )(y2, xt, scale2, shift2)

    return jnp.transpose(out_slab.reshape(C, N, L), (1, 0, 2))


# ---------------- pure-JAX reference (for sanity check) ----------------

def _conv_ref(x, w, b):
    y = lax.conv_general_dilated(x, w, window_strides=(1,), padding=((1, 1),),
                                 dimension_numbers=('NCH', 'OIH', 'NCH'))
    return y + b[None, :, None]


def _bn_ref(x, gamma, beta):
    mean = jnp.mean(x, axis=(0, 2), keepdims=True)
    var = jnp.mean((x - mean) ** 2, axis=(0, 2), keepdims=True)
    return gamma[None, :, None] * (x - mean) * lax.rsqrt(var + EPS) + beta[None, :, None]


def basic_block_ref(x, params):
    w1, b1, g1, be1, w2, b2, g2, be2 = params
    out = jnp.maximum(_bn_ref(_conv_ref(x, w1, b1), g1, be1), 0.0)
    out = _bn_ref(_conv_ref(out, w2, b2), g2, be2)
    return jnp.maximum(out + x, 0.0)


if __name__ == "__main__":
    N, C, L = 2, 8, 16            # batch, n_features, sequence length
    key = jax.random.PRNGKey(0)
    kx, kw1, kb1, kw2, kb2 = jax.random.split(key, 5)

    x = jax.random.normal(kx, (N, C, L), jnp.float32)
    params = (
        jax.random.normal(kw1, (C, C, 3), jnp.float32) * 0.1,   # conv1 weight
        jax.random.normal(kb1, (C,), jnp.float32) * 0.1,        # conv1 bias
        jnp.ones((C,), jnp.float32),                            # bn1 gamma
        jnp.zeros((C,), jnp.float32),                           # bn1 beta
        jax.random.normal(kw2, (C, C, 3), jnp.float32) * 0.1,   # conv2 weight
        jax.random.normal(kb2, (C,), jnp.float32) * 0.1,        # conv2 bias
        jnp.ones((C,), jnp.float32),                            # bn2 gamma
        jnp.zeros((C,), jnp.float32),                           # bn2 beta
    )

    out = jax.block_until_ready(jax.jit(basic_block)(x, params))
    ref = jax.block_until_ready(basic_block_ref(x, params))
    np.testing.assert_allclose(np.asarray(out), np.asarray(ref), rtol=1e-4, atol=1e-4)
    print("KERNEL_OK")
</pallas_src>

<mosaic_0001>
module attributes {stable_mosaic.version = 11 : i64} {
  func.func @conv_stats_kernel(%arg0: i32, %arg1: memref<8x32xf32, #tpu.memory_space<vmem>>, %arg2: memref<8x24xf32, #tpu.memory_space<vmem>>, %arg3: memref<8x32xf32, #tpu.memory_space<vmem>>, %arg4: memref<1x8x2xf32, #tpu.memory_space<vmem>>) attributes {dimension_semantics = [#tpu.dimension_semantics<parallel>], iteration_bounds = array<i64: 1>, scalar_prefetch = 0 : i64, scratch_operands = 0 : i64, tpu.core_type = #tpu.core_type<tc>, window_params = [{transform_indices = @transform_0, window_bounds = array<i64: 8, 32>}, {pipeline_mode = #tpu.pipeline_mode<synchronous>, transform_indices = @transform_1, window_bounds = array<i64: 8, 24>}, {transform_indices = @transform_2, window_bounds = array<i64: 8, 32>}, {transform_indices = @transform_3, window_bounds = array<i64: 1, 8, 2>}]} {
    %c0 = arith.constant 0 : index
    %c0_0 = arith.constant 0 : index
    %0 = vector.load %arg1[%c0, %c0_0] : memref<8x32xf32, #tpu.memory_space<vmem>>, vector<8x32xf32>
    %1 = tpu.iota {dimensions = array<i32: 1>} : vector<8x32xi32>
    %c16_i32 = arith.constant 16 : i32
    %c0_i32 = arith.constant 0 : i32
    %2 = arith.cmpi eq, %c16_i32, %c0_i32 : i32
    %c1_i32 = arith.constant 1 : i32
    %3 = arith.select %2, %c1_i32, %c16_i32 : i32
    %4 = vector.broadcast %3 : i32 to vector<8x32xi32>
    %5 = arith.remsi %1, %4 : vector<8x32xi32>
    %c0_i32_1 = arith.constant 0 : i32
    %6 = vector.broadcast %c0_i32_1 : i32 to vector<8x32xi32>
    %7 = arith.cmpi ne, %5, %6 : vector<8x32xi32>
    %c0_i32_2 = arith.constant 0 : i32
    %8 = vector.broadcast %c0_i32_2 : i32 to vector<8x32xi32>
    %9 = arith.cmpi slt, %5, %8 : vector<8x32xi32>
    %c0_i32_3 = arith.constant 0 : i32
    %10 = arith.cmpi slt, %3, %c0_i32_3 : i32
    %11 = vector.broadcast %10 : i1 to vector<8x32xi1>
    %12 = vector.broadcast %11 : vector<8x32xi1> to vector<8x32xi1>
    %13 = arith.xori %9, %12 : vector<8x32xi1>
    %14 = arith.andi %13, %7 : vector<8x32xi1>
    %15 = vector.broadcast %3 : i32 to vector<8x32xi32>
    %16 = arith.addi %5, %15 : vector<8x32xi32>
    %17 = arith.select %14, %16, %5 : vector<8x32xi1>, vector<8x32xi32>
    %c1_i32_4 = arith.constant 1 : i32
    %18 = tpu.dynamic_rotate %0 by %c1_i32_4 dim 1 : vector<8x32xf32>, i32 -> vector<8x32xf32>
    %c31_i32 = arith.constant 31 : i32
    %19 = tpu.dynamic_rotate %0 by %c31_i32 dim 1 : vector<8x32xf32>, i32 -> vector<8x32xf32>
    %c0_i32_5 = arith.constant 0 : i32
    %20 = vector.broadcast %c0_i32_5 : i32 to vector<8x32xi32>
    %21 = arith.cmpi eq, %17, %20 : vector<8x32xi32>
    %cst = arith.constant 0.000000e+00 : f32
    %22 = vector.broadcast %cst : f32 to vector<8x32xf32>
    %23 = arith.select %21, %22, %18 : vector<8x32xi1>, vector<8x32xf32>
    %c15_i32 = arith.constant 15 : i32
    %24 = vector.broadcast %c15_i32 : i32 to vector<8x32xi32>
    %25 = arith.cmpi eq, %17, %24 : vector<8x32xi32>
    %cst_6 = arith.constant 0.000000e+00 : f32
    %26 = vector.broadcast %cst_6 : f32 to vector<8x32xf32>
    %27 = arith.select %25, %26, %19 : vector<8x32xi1>, vector<8x32xf32>
    %28 = tpu.concatenate %23, %0, %27 in 0 : vector<8x32xf32>, vector<8x32xf32>, vector<8x32xf32> -> vector<24x32xf32>
    %c0_7 = arith.constant 0 : index
    %c0_8 = arith.constant 0 : index
    %29 = vector.load %arg2[%c0_7, %c0_8] : memref<8x24xf32, #tpu.memory_space<vmem>>, vector<8x24xf32>
    %cst_9 = arith.constant dense<0.000000e+00> : vector<8x32xf32>
    %30 = tpu.matmul %29, %28, %cst_9 {dimension_numbers = #tpu.dot_dimension_numbers<[1], [0], [0], [1], [0, 0, 1, 1], [], []>} : vector<8x24xf32>, vector<24x32xf32>, vector<8x32xf32> -> vector<8x32xf32>
    %c0_10 = arith.constant 0 : index
    %c0_11 = arith.constant 0 : index
    %31 = vector.load %arg3[%c0_10, %c0_11] : memref<8x32xf32, #tpu.memory_space<vmem>>, vector<8x32xf32>
    tpu.vector_store %arg3[%c0_10, %c0_11], %30 {strides = array<i32>} : memref<8x32xf32, #tpu.memory_space<vmem>>, vector<8x32xf32>,
    %cst_12 = arith.constant dense<0.000000e+00> : vector<8xf32>
    %32 = vector.multi_reduction <add>, %30, %cst_12 [1] : vector<8x32xf32> to vector<8xf32>
    %33 = vector.shape_cast %32 : vector<8xf32> to vector<8x1xf32>
    %34 = arith.mulf %30, %30 : vector<8x32xf32>
    %cst_13 = arith.constant dense<0.000000e+00> : vector<8xf32>
    %35 = vector.multi_reduction <add>, %34, %cst_13 [1] : vector<8x32xf32> to vector<8xf32>
    %36 = vector.shape_cast %35 : vector<8xf32> to vector<8x1xf32>
    %37 = tpu.concatenate %33, %36 in 1 : vector<8x1xf32>, vector<8x1xf32> -> vector<8x2xf32>
    %c0_14 = arith.constant 0 : index
    %c0_15 = arith.constant 0 : index
    %c0_16 = arith.constant 0 : index
    %38 = vector.load %arg4[%c0_14, %c0_15, %c0_16] : memref<1x8x2xf32, #tpu.memory_space<vmem>>, vector<1x8x2xf32>
    %39 = vector.shape_cast %38 : vector<1x8x2xf32> to vector<8x2xf32>
    %40 = vector.shape_cast %37 : vector<8x2xf32> to vector<1x8x2xf32>
    tpu.vector_store %arg4[%c0_14, %c0_15, %c0_16], %40 {strides = array<i32>} : memref<1x8x2xf32, #tpu.memory_space<vmem>>, vector<1x8x2xf32>,
    return
  }
  func.func @transform_0(%arg0: i32) -> (i32, i32) {
    %c0_i32 = arith.constant 0 : i32
    %c0_i32_0 = arith.constant 0 : i32
    return %c0_i32, %arg0 : i32, i32
  }
  func.func @transform_1(%arg0: i32) -> (i32, i32) {
    %c0_i32 = arith.constant 0 : i32
    %c0_i32_0 = arith.constant 0 : i32
    %c0_i32_1 = arith.constant 0 : i32
    return %c0_i32, %c0_i32_0 : i32, i32
  }
  func.func @transform_2(%arg0: i32) -> (i32, i32) {
    %c0_i32 = arith.constant 0 : i32
    %c0_i32_0 = arith.constant 0 : i32
    return %c0_i32, %arg0 : i32, i32
  }
  func.func @transform_3(%arg0: i32) -> (i32, i32, i32) {
    %c0_i32 = arith.constant 0 : i32
    %c0_i32_0 = arith.constant 0 : i32
    %c0_i32_1 = arith.constant 0 : i32
    return %arg0, %c0_i32, %c0_i32_0 : i32, i32, i32
  }
}

module attributes {stable_mosaic.version = 11 : i64} {
  func.func @bn_res_relu_kernel(%arg0: i32, %arg1: memref<8x32xf32, #tpu.memory_space<vmem>>, %arg2: memref<8x32xf32, #tpu.memory_space<vmem>>, %arg3: memref<8x1xf32, #tpu.memory_space<vmem>>, %arg4: memref<8x1xf32, #tpu.memory_space<vmem>>, %arg5: memref<8x32xf32, #tpu.memory_space<vmem>>) attributes {dimension_semantics = [#tpu.dimension_semantics<parallel>], iteration_bounds = array<i64: 1>, scalar_prefetch = 0 : i64, scratch_operands = 0 : i64, tpu.core_type = #tpu.core_type<tc>, window_params = [{transform_indices = @transform_0, window_bounds = array<i64: 8, 32>}, {transform_indices = @transform_1, window_bounds = array<i64: 8, 32>}, {pipeline_mode = #tpu.pipeline_mode<synchronous>, transform_indices = @transform_2, window_bounds = array<i64: 8, 1>}, {pipeline_mode = #tpu.pipeline_mode<synchronous>, transform_indices = @transform_3, window_bounds = array<i64: 8, 1>}, {transform_indices = @transform_4, window_bounds = array<i64: 8, 32>}]} {
    %c0 = arith.constant 0 : index
    %c0_0 = arith.constant 0 : index
    %0 = vector.load %arg3[%c0, %c0_0] : memref<8x1xf32, #tpu.memory_space<vmem>>, vector<8x1xf32>
    %c0_1 = arith.constant 0 : index
    %c0_2 = arith.constant 0 : index
    %1 = vector.load %arg1[%c0_1, %c0_2] : memref<8x32xf32, #tpu.memory_space<vmem>>, vector<8x32xf32>
    %2 = vector.broadcast %0 : vector<8x1xf32> to vector<8x32xf32>
    %3 = arith.mulf %2, %1 : vector<8x32xf32>
    %c0_3 = arith.constant 0 : index
    %c0_4 = arith.constant 0 : index
    %4 = vector.load %arg4[%c0_3, %c0_4] : memref<8x1xf32, #tpu.memory_space<vmem>>, vector<8x1xf32>
    %5 = vector.broadcast %4 : vector<8x1xf32> to vector<8x32xf32>
    %6 = arith.addf %3, %5 : vector<8x32xf32>
    %c0_5 = arith.constant 0 : index
    %c0_6 = arith.constant 0 : index
    %7 = vector.load %arg2[%c0_5, %c0_6] : memref<8x32xf32, #tpu.memory_space<vmem>>, vector<8x32xf32>
    %8 = arith.addf %6, %7 : vector<8x32xf32>
    %cst = arith.constant 0.000000e+00 : f32
    %9 = vector.broadcast %cst : f32 to vector<8x32xf32>
    %10 = arith.maximumf %8, %9 : vector<8x32xf32>
    %c0_7 = arith.constant 0 : index
    %c0_8 = arith.constant 0 : index
    %11 = vector.load %arg5[%c0_7, %c0_8] : memref<8x32xf32, #tpu.memory_space<vmem>>, vector<8x32xf32>
    tpu.vector_store %arg5[%c0_7, %c0_8], %10 {strides = array<i32>} : memref<8x32xf32, #tpu.memory_space<vmem>>, vector<8x32xf32>,
    return
  }
  func.func @transform_0(%arg0: i32) -> (i32, i32) {
    %c0_i32 = arith.constant 0 : i32
    %c0_i32_0 = arith.constant 0 : i32
    return %c0_i32, %arg0 : i32, i32
  }
  func.func @transform_1(%arg0: i32) -> (i32, i32) {
    %c0_i32 = arith.constant 0 : i32
    %c0_i32_0 = arith.constant 0 : i32
    return %c0_i32, %arg0 : i32, i32
  }
  func.func @transform_2(%arg0: i32) -> (i32, i32) {
    %c0_i32 = arith.constant 0 : i32
    %c0_i32_0 = arith.constant 0 : i32
    %c0_i32_1 = arith.constant 0 : i32
    return %c0_i32, %c0_i32_0 : i32, i32
  }
  func.func @transform_3(%arg0: i32) -> (i32, i32) {
    %c0_i32 = arith.constant 0 : i32
    %c0_i32_0 = arith.constant 0 : i32
    %c0_i32_1 = arith.constant 0 : i32
    return %c0_i32, %c0_i32_0 : i32, i32
  }
  func.func @transform_4(%arg0: i32) -> (i32, i32) {
    %c0_i32 = arith.constant 0 : i32
    %c0_i32_0 = arith.constant 0 : i32
    return %c0_i32, %arg0 : i32, i32
  }
}

module attributes {stable_mosaic.version = 11 : i64} {
  func.func @bn_relu_conv_stats_kernel(%arg0: i32, %arg1: memref<8x32xf32, #tpu.memory_space<vmem>>, %arg2: memref<8x1xf32, #tpu.memory_space<vmem>>, %arg3: memref<8x1xf32, #tpu.memory_space<vmem>>, %arg4: memref<8x24xf32, #tpu.memory_space<vmem>>, %arg5: memref<8x32xf32, #tpu.memory_space<vmem>>, %arg6: memref<1x8x2xf32, #tpu.memory_space<vmem>>) attributes {dimension_semantics = [#tpu.dimension_semantics<parallel>], iteration_bounds = array<i64: 1>, scalar_prefetch = 0 : i64, scratch_operands = 0 : i64, tpu.core_type = #tpu.core_type<tc>, window_params = [{transform_indices = @transform_0, window_bounds = array<i64: 8, 32>}, {pipeline_mode = #tpu.pipeline_mode<synchronous>, transform_indices = @transform_1, window_bounds = array<i64: 8, 1>}, {pipeline_mode = #tpu.pipeline_mode<synchronous>, transform_indices = @transform_2, window_bounds = array<i64: 8, 1>}, {pipeline_mode = #tpu.pipeline_mode<synchronous>, transform_indices = @transform_3, window_bounds = array<i64: 8, 24>}, {transform_indices = @transform_4, window_bounds = array<i64: 8, 32>}, {transform_indices = @transform_5, window_bounds = array<i64: 1, 8, 2>}]} {
    %c0 = arith.constant 0 : index
    %c0_0 = arith.constant 0 : index
    %0 = vector.load %arg2[%c0, %c0_0] : memref<8x1xf32, #tpu.memory_space<vmem>>, vector<8x1xf32>
    %c0_1 = arith.constant 0 : index
    %c0_2 = arith.constant 0 : index
    %1 = vector.load %arg1[%c0_1, %c0_2] : memref<8x32xf32, #tpu.memory_space<vmem>>, vector<8x32xf32>
    %2 = vector.broadcast %0 : vector<8x1xf32> to vector<8x32xf32>
    %3 = arith.mulf %2, %1 : vector<8x32xf32>
    %c0_3 = arith.constant 0 : index
    %c0_4 = arith.constant 0 : index
    %4 = vector.load %arg3[%c0_3, %c0_4] : memref<8x1xf32, #tpu.memory_space<vmem>>, vector<8x1xf32>
    %5 = vector.broadcast %4 : vector<8x1xf32> to vector<8x32xf32>
    %6 = arith.addf %3, %5 : vector<8x32xf32>
    %cst = arith.constant 0.000000e+00 : f32
    %7 = vector.broadcast %cst : f32 to vector<8x32xf32>
    %8 = arith.maximumf %6, %7 : vector<8x32xf32>
    %9 = tpu.iota {dimensions = array<i32: 1>} : vector<8x32xi32>
    %c16_i32 = arith.constant 16 : i32
    %c0_i32 = arith.constant 0 : i32
    %10 = arith.cmpi eq, %c16_i32, %c0_i32 : i32
    %c1_i32 = arith.constant 1 : i32
    %11 = arith.select %10, %c1_i32, %c16_i32 : i32
    %12 = vector.broadcast %11 : i32 to vector<8x32xi32>
    %13 = arith.remsi %9, %12 : vector<8x32xi32>
    %c0_i32_5 = arith.constant 0 : i32
    %14 = vector.broadcast %c0_i32_5 : i32 to vector<8x32xi32>
    %15 = arith.cmpi ne, %13, %14 : vector<8x32xi32>
    %c0_i32_6 = arith.constant 0 : i32
    %16 = vector.broadcast %c0_i32_6 : i32 to vector<8x32xi32>
    %17 = arith.cmpi slt, %13, %16 : vector<8x32xi32>
    %c0_i32_7 = arith.constant 0 : i32
    %18 = arith.cmpi slt, %11, %c0_i32_7 : i32
    %19 = vector.broadcast %18 : i1 to vector<8x32xi1>
    %20 = vector.broadcast %19 : vector<8x32xi1> to vector<8x32xi1>
    %21 = arith.xori %17, %20 : vector<8x32xi1>
    %22 = arith.andi %21, %15 : vector<8x32xi1>
    %23 = vector.broadcast %11 : i32 to vector<8x32xi32>
    %24 = arith.addi %13, %23 : vector<8x32xi32>
    %25 = arith.select %22, %24, %13 : vector<8x32xi1>, vector<8x32xi32>
    %c1_i32_8 = arith.constant 1 : i32
    %26 = tpu.dynamic_rotate %8 by %c1_i32_8 dim 1 : vector<8x32xf32>, i32 -> vector<8x32xf32>
    %c31_i32 = arith.constant 31 : i32
    %27 = tpu.dynamic_rotate %8 by %c31_i32 dim 1 : vector<8x32xf32>, i32 -> vector<8x32xf32>
    %c0_i32_9 = arith.constant 0 : i32
    %28 = vector.broadcast %c0_i32_9 : i32 to vector<8x32xi32>
    %29 = arith.cmpi eq, %25, %28 : vector<8x32xi32>
    %cst_10 = arith.constant 0.000000e+00 : f32
    %30 = vector.broadcast %cst_10 : f32 to vector<8x32xf32>
    %31 = arith.select %29, %30, %26 : vector<8x32xi1>, vector<8x32xf32>
    %c15_i32 = arith.constant 15 : i32
    %32 = vector.broadcast %c15_i32 : i32 to vector<8x32xi32>
    %33 = arith.cmpi eq, %25, %32 : vector<8x32xi32>
    %cst_11 = arith.constant 0.000000e+00 : f32
    %34 = vector.broadcast %cst_11 : f32 to vector<8x32xf32>
    %35 = arith.select %33, %34, %27 : vector<8x32xi1>, vector<8x32xf32>
    %36 = tpu.concatenate %31, %8, %35 in 0 : vector<8x32xf32>, vector<8x32xf32>, vector<8x32xf32> -> vector<24x32xf32>
    %c0_12 = arith.constant 0 : index
    %c0_13 = arith.constant 0 : index
    %37 = vector.load %arg4[%c0_12, %c0_13] : memref<8x24xf32, #tpu.memory_space<vmem>>, vector<8x24xf32>
    %cst_14 = arith.constant dense<0.000000e+00> : vector<8x32xf32>
    %38 = tpu.matmul %37, %36, %cst_14 {dimension_numbers = #tpu.dot_dimension_numbers<[1], [0], [0], [1], [0, 0, 1, 1], [], []>} : vector<8x24xf32>, vector<24x32xf32>, vector<8x32xf32> -> vector<8x32xf32>
    %c0_15 = arith.constant 0 : index
    %c0_16 = arith.constant 0 : index
    %39 = vector.load %arg5[%c0_15, %c0_16] : memref<8x32xf32, #tpu.memory_space<vmem>>, vector<8x32xf32>
    tpu.vector_store %arg5[%c0_15, %c0_16], %38 {strides = array<i32>} : memref<8x32xf32, #tpu.memory_space<vmem>>, vector<8x32xf32>,
    %cst_17 = arith.constant dense<0.000000e+00> : vector<8xf32>
    %40 = vector.multi_reduction <add>, %38, %cst_17 [1] : vector<8x32xf32> to vector<8xf32>
    %41 = vector.shape_cast %40 : vector<8xf32> to vector<8x1xf32>
    %42 = arith.mulf %38, %38 : vector<8x32xf32>
    %cst_18 = arith.constant dense<0.000000e+00> : vector<8xf32>
    %43 = vector.multi_reduction <add>, %42, %cst_18 [1] : vector<8x32xf32> to vector<8xf32>
    %44 = vector.shape_cast %43 : vector<8xf32> to vector<8x1xf32>
    %45 = tpu.concatenate %41, %44 in 1 : vector<8x1xf32>, vector<8x1xf32> -> vector<8x2xf32>
    %c0_19 = arith.constant 0 : index
    %c0_20 = arith.constant 0 : index
    %c0_21 = arith.constant 0 : index
    %46 = vector.load %arg6[%c0_19, %c0_20, %c0_21] : memref<1x8x2xf32, #tpu.memory_space<vmem>>, vector<1x8x2xf32>
    %47 = vector.shape_cast %46 : vector<1x8x2xf32> to vector<8x2xf32>
    %48 = vector.shape_cast %45 : vector<8x2xf32> to vector<1x8x2xf32>
    tpu.vector_store %arg6[%c0_19, %c0_20, %c0_21], %48 {strides = array<i32>} : memref<1x8x2xf32, #tpu.memory_space<vmem>>, vector<1x8x2xf32>,
    return
  }
  func.func @transform_0(%arg0: i32) -> (i32, i32) {
    %c0_i32 = arith.constant 0 : i32
    %c0_i32_0 = arith.constant 0 : i32
    return %c0_i32, %arg0 : i32, i32
  }
  func.func @transform_1(%arg0: i32) -> (i32, i32) {
    %c0_i32 = arith.constant 0 : i32
    %c0_i32_0 = arith.constant 0 : i32
    %c0_i32_1 = arith.constant 0 : i32
    return %c0_i32, %c0_i32_0 : i32, i32
  }
  func.func @transform_2(%arg0: i32) -> (i32, i32) {
    %c0_i32 = arith.constant 0 : i32
    %c0_i32_0 = arith.constant 0 : i32
    %c0_i32_1 = arith.constant 0 : i32
    return %c0_i32, %c0_i32_0 : i32, i32
  }
  func.func @transform_3(%arg0: i32) -> (i32, i32) {
    %c0_i32 = arith.constant 0 : i32
    %c0_i32_0 = arith.constant 0 : i32
    %c0_i32_1 = arith.constant 0 : i32
    return %c0_i32, %c0_i32_0 : i32, i32
  }
  func.func @transform_4(%arg0: i32) -> (i32, i32) {
    %c0_i32 = arith.constant 0 : i32
    %c0_i32_0 = arith.constant 0 : i32
    return %c0_i32, %arg0 : i32, i32
  }
  func.func @transform_5(%arg0: i32) -> (i32, i32, i32) {
    %c0_i32 = arith.constant 0 : i32
    %c0_i32_0 = arith.constant 0 : i32
    %c0_i32_1 = arith.constant 0 : i32
    return %arg0, %c0_i32, %c0_i32_0 : i32, i32, i32
  }
}

</mosaic_0001>

<llo_original>
// kernel: basic_block.5
$region0: #{basic_block.5}
  #allocation0 [shape = 'u32[]', space=smem, size = 0x4, offset = 0x4, fixed_abs, tag = 'smem constant byte address 0x4 - core index']
  #allocation1 [shape = 'u32[144,128]{1,0:T(1,128)}', space=vmem, size = 0x12000, scoped, tag = 'internal scratch']
  %s0 = inlined_call_operand.vmem [shape: f32[8,32], index: 0, kind: input, shape index: {}]
  %s1 = inlined_call_operand.vmem [shape: f32[8,32], index: 1, kind: input, shape index: {}]
  %s2 = inlined_call_operand.vmem [shape: f32[8,1], index: 2, kind: input, shape index: {}]
  %s3 = inlined_call_operand.vmem [shape: f32[8,1], index: 3, kind: input, shape index: {}]
  %s4 = inlined_call_operand.vmem [shape: f32[8,32], index: 4, kind: output, shape index: {}]
  %s5 = sld [smem:[#allocation0]]
  $region26: #{basic_block.5} parent=0
    _
  %s7 = ssub.s32 1, %s5
  %s8 = scalar_select 0, %s7, %s5
  // Predicated region
  $region2: #{basic_block.5} parent=0 // pred_check
    _
  $region3: #{basic_block.5} parent=0 // pred_check_branch
    %10 = sbr.rel (0) target = $region5
  $region4: #{basic_block.5} parent=0 // pred_region
    _
  $region5: #{basic_block.5} parent=0 // pred_fallthru
    _
  // Predicated region
  $region6: #{basic_block.5} parent=0 // pred_check
    _
  $region7: #{basic_block.5} parent=0 // pred_check_branch
    %12 = sbr.rel (0) target = $region9
  $region8: #{basic_block.5} parent=0 // pred_region
    _
  $region9: #{basic_block.5} parent=0 // pred_fallthru
    _
  // Predicated region
  $region10: #{basic_block.5} parent=0 // pred_check
    _
  $region11: #{basic_block.5} parent=0 // pred_check_branch
    %14 = sbr.rel (0) target = $region13
  $region12: #{basic_block.5} parent=0 // pred_region
    _
  $region13: #{basic_block.5} parent=0 // pred_fallthru
    _
  // Predicated region
  $region14: #{basic_block.5} parent=0 // pred_check
    _
  $region15: #{basic_block.5} parent=0 // pred_check_branch
    %16 = sbr.rel (0) target = $region17
  $region16: #{basic_block.5} parent=0 // pred_region
    _
  $region17: #{basic_block.5} parent=0 // pred_fallthru
    _
  %v17 = vld [vmem:[%s2] sm:$0xff]
  %v18 = vld [vmem:[%s0] sm:$0xff]
  %20 = vset.pattern.permute.xlu0 0
  %21 = vperm.xlu0 %20, %v17
  %v22 = vpop.permute.xlu0 %21
  %v24 = vmul.f32 %v22, %v18
  %v25 = vld [vmem:[%s3] sm:$0xff]
  %27 = vset.pattern.permute.xlu0 0
  %28 = vperm.xlu0 %27, %v25
  %v29 = vpop.permute.xlu0 %28
  %v31 = vadd.f32 %v24, %v29
  %v32 = vld [vmem:[%s1] sm:$0xff]
  %v33 = vadd.f32 %v31, %v32
  %v34 = vmax.f32 %v33, 0.0
  %vm35 = vcmask 261120
  %36 = vst.msk [vmem:[%s4] sm:$0xff] %vm35, %v34
  // Predicated region
  $region18: #{basic_block.5} parent=0 // pred_check
    _
  $region19: #{basic_block.5} parent=0 // pred_check_branch
    %38 = sbr.rel (0) target = $region21
  $region20: #{basic_block.5} parent=0 // pred_region
    _
  $region21: #{basic_block.5} parent=0 // pred_fallthru
    _
  // Predicated region
  $region22: #{basic_block.5} parent=0 // pred_check
    _
  $region23: #{basic_block.5} parent=0 // pred_check_branch
    %40 = sbr.rel (0) target = $region25
  $region24: #{basic_block.5} parent=0 // pred_region
    _
  $region25: #{basic_block.5} parent=0 // pred_fallthru
    _

// kernel: basic_block.3
$region0: #{basic_block.3}
  #allocation0 [shape = 'u32[]', space=smem, size = 0x4, offset = 0x4, fixed_abs, tag = 'smem constant byte address 0x4 - core index']
  #allocation1 [shape = 'u32[144,128]{1,0:T(1,128)}', space=vmem, size = 0x12000, scoped, tag = 'internal scratch']
  %s0 = inlined_call_operand.vmem [shape: f32[8,32], index: 0, kind: input, shape index: {}]
  %s1 = inlined_call_operand.vmem [shape: f32[8,24], index: 1, kind: input, shape index: {}]
  %s2 = inlined_call_operand.vmem [shape: f32[8,32], index: 2, kind: output, shape index: {0}]
  %s3 = inlined_call_operand.vmem [shape: f32[1,8,2], index: 3, kind: output, shape index: {1}]
  %4 = xla_tuple %s2, %s3
  %s5 = sld [smem:[#allocation0]]
  $region26: #{basic_block.3} parent=0
    _
  %s7 = ssub.s32 1, %s5
  %s8 = scalar_select 0, %s7, %s5
  // Predicated region
  $region2: #{basic_block.3} parent=0 // pred_check
    _
  $region3: #{basic_block.3} parent=0 // pred_check_branch
    %10 = sbr.rel (0) target = $region5
  $region4: #{basic_block.3} parent=0 // pred_region
    _
  $region5: #{basic_block.3} parent=0 // pred_fallthru
    _
  // Predicated region
  $region6: #{basic_block.3} parent=0 // pred_check
    _
  $region7: #{basic_block.3} parent=0 // pred_check_branch
    %12 = sbr.rel (0) target = $region9
  $region8: #{basic_block.3} parent=0 // pred_region
    _
  $region9: #{basic_block.3} parent=0 // pred_fallthru
    _
  %v13 = vld [vmem:[%s0] sm:$0xff]
  %v14 = vlaneseq
  %v15 = vand.u32 %v14, 127
  %vm16 = vcmp.lt.s32.totalorder %v15, 0
  %v17 = vsub.s32 0, %v15
  %v18 = vsel %vm16, %v17, %v15
  %v19 = vshrl.u32 %v18, 4
  %v20 = vand.u32 %v18, 15
  %v21 = vsub.s32 0, %v20
  %v22 = vsel %vm16, %v21, %v20
  %vm23 = vcmp.ne.s32.totalorder %v22, 0
  %vm24 = vcmp.lt.s32.totalorder %v22, 0
  %vm25 = vmand %vm24, %vm23
  %v26 = vadd.s32 %v22, 16
  %v27 = vsel %vm25, %v26, %v22
  %vm28 = vcmask 1047808
  %29 = vrot.lane.b32.xlu0 %v13, 32
  %v30 = vpop.permute.xlu0 %29
  %v31 = vsel %vm28, %v30, %v13
  %32 = vrot.lane.b32.xlu0 %v31, 32
  %v33 = vpop.permute.xlu0 %32
  %v34 = vsel %vm28, %v33, %v13
  %vm35 = vcmp.eq.s32.totalorder %v27, 0
  %37 = vrot.lane.b32.xlu0 %v34, 97
  %v38 = vpop.permute.xlu0 %37
  %v40 = vsel %vm35, 0.0, %v38
  %vm41 = vcmp.eq.s32.totalorder %v27, 15
  %42 = vrot.lane.b32.xlu0 %v34, 127
  %v43 = vpop.permute.xlu0 %42
  %v45 = vsel %vm41, 0.0, %v43
  %v46 = vld [vmem:[%s1] sm:$0xff]
  %vm47 = vcmask 195584
  %v49 = vsel %vm47, %v46, 0
  %51 = vmatprep.subr.mxu0 0.0
  %52 = vmatpush1.msra.mxu0 %v40
  %53 = vmatprep.subr.mxu0 0.0
  %54 = vmatpush1.msra.mxu0 %v13
  %55 = vmatprep.subr.mxu0 0.0
  %56 = vmatpush1.msra.mxu0 %v45
  %57 = vmatprep.subr.mxu0 0.0
  %58 = vmatpush1.msra.mxu0 0.0
  %59 = vmatprep.subr.mxu0 0.0
  %60 = vmatpush1.msra.mxu0 0.0
  %61 = vmatprep.subr.mxu0 0.0
  %62 = vmatpush1.msra.mxu0 0.0
  %63 = vmatprep.subr.mxu0 0.0
  %64 = vmatpush1.msra.mxu0 0.0
  %65 = vmatprep.subr.mxu0 0.0
  %66 = vmatpush1.msra.mxu0 0.0
  %67 = vmatprep.subr.mxu0 0.0
  %68 = vmatpush1.msra.mxu0 0.0
  %69 = vmatprep.subr.mxu0 0.0
  %70 = vmatpush1.msra.mxu0 0.0
  %71 = vmatprep.subr.mxu0 0.0
  %72 = vmatpush1.msra.mxu0 0.0
  %73 = vmatprep.subr.mxu0 0.0
  %74 = vmatpush1.msra.mxu0 0.0
  %75 = vmatprep.subr.mxu0 0.0
  %76 = vmatpush1.msra.mxu0 0.0
  %77 = vmatprep.subr.mxu0 0.0
  %78 = vmatpush1.msra.mxu0 0.0
  %79 = vmatprep.subr.mxu0 0.0
  %80 = vmatpush1.msra.mxu0 0.0
  %81 = vmatprep.subr.mxu0 0.0
  %82 = vmatpush1.msra.mxu0 0.0
  %83 = vmatprep.subr.mxu0 0.0
  %84 = vmatpush1.msra.mxu0 0.0
  %85 = vmatprep.subr.mxu0 0.0
  %86 = vmatpush1.msra.mxu0 0.0
  %87 = vmatprep.subr.mxu0 0.0
  %88 = vmatpush1.msra.mxu0 0.0
  %89 = vmatprep.subr.mxu0 0.0
  %90 = vmatpush1.msra.mxu0 0.0
  %91 = vmatprep.subr.mxu0 0.0
  %92 = vmatpush1.msra.mxu0 0.0
  %93 = vmatprep.subr.mxu0 0.0
  %94 = vmatpush1.msra.mxu0 0.0
  %95 = vmatprep.subr.mxu0 0.0
  %96 = vmatpush1.msra.mxu0 0.0
  %97 = vmatprep.subr.mxu0 0.0
  %98 = vmatpush1.msra.mxu0 0.0
  %99 = vmatprep.subr.mxu0 0.0
  %100 = vmatpush1.msra.mxu0 0.0
  %101 = vmatprep.subr.mxu0 0.0
  %102 = vmatpush1.msra.mxu0 0.0
  %103 = vmatprep.subr.mxu0 0.0
  %104 = vmatpush1.msra.mxu0 0.0
  %105 = vmatprep.subr.mxu0 0.0
  %106 = vmatpush1.msra.mxu0 0.0
  %107 = vmatprep.subr.mxu0 0.0
  %108 = vmatpush1.msra.mxu0 0.0
  %109 = vmatprep.subr.mxu0 0.0
  %110 = vmatpush1.msra.mxu0 0.0
  %111 = vmatprep.subr.mxu0 0.0
  %112 = vmatpush1.msra.mxu0 0.0
  %113 = vmatprep.subr.mxu0 0.0
  %114 = vmatpush1.msra.mxu0 0.0
  %115 = vmatprep.mubr.f32.mxu0 0.0
  %116 = vmatmul.mubr.f32.gmra.mrb[0].mxu0 %v49
  %v117 = vpop.f32.mrb[0].mxu0
  %v118 = vadd.f32 0.0, %v117
  %v119 = vpop.f32.mrb[0].mxu0
  %120 = vdwg.mxu0
  %vm121 = vcmask 261120
  %122 = vst.msk [vmem:[%s2] sm:$0xff] %vm121, %v118
  %v123 = vsel %vm121, %v118, 0.0
  %124 = vadd.xlane.f32.xlu0 %v123
  %v125 = vpop.xlane.xlu0 %124
  %v126 = vmul.f32 %v118, %v118
  %v127 = vsel %vm121, %v126, 0.0
  %128 = vadd.xlane.f32.xlu0 %v127
  %v129 = vpop.xlane.xlu0 %128
  %vm130 = vcmask 7168
  %v131 = vsel %vm130, %v125, %v129
  %vm132 = vcmask 15360
  %133 = vst.msk [vmem:[%s3] sm:$0xff] %vm132, %v131
  // Predicated region
  $region10: #{basic_block.3} parent=0 // pred_check
    _
  $region11: #{basic_block.3} parent=0 // pred_check_branch
    %135 = sbr.rel (0) target = $region13
  $region12: #{basic_block.3} parent=0 // pred_region
    _
  $region13: #{basic_block.3} parent=0 // pred_fallthru
    _
  // Predicated region
  $region14: #{basic_block.3} parent=0 // pred_check
    _
  $region15: #{basic_block.3} parent=0 // pred_check_branch
    %137 = sbr.rel (0) target = $region17
  $region16: #{basic_block.3} parent=0 // pred_region
    _
  $region17: #{basic_block.3} parent=0 // pred_fallthru
    _
  // Predicated region
  $region18: #{basic_block.3} parent=0 // pred_check
    _
  $region19: #{basic_block.3} parent=0 // pred_check_branch
    %139 = sbr.rel (0) target = $region21
  $region20: #{basic_block.3} parent=0 // pred_region
    _
  $region21: #{basic_block.3} parent=0 // pred_fallthru
    _
  // Predicated region
  $region22: #{basic_block.3} parent=0 // pred_check
    _
  $region23: #{basic_block.3} parent=0 // pred_check_branch
    %141 = sbr.rel (0) target = $region25
  $region24: #{basic_block.3} parent=0 // pred_region
    _
  $region25: #{basic_block.3} parent=0 // pred_fallthru
    _

// kernel: basic_block.4
$region0: #{basic_block.4}
  #allocation0 [shape = 'u32[]', space=smem, size = 0x4, offset = 0x4, fixed_abs, tag = 'smem constant byte address 0x4 - core index']
  #allocation1 [shape = 'u32[144,128]{1,0:T(1,128)}', space=vmem, size = 0x12000, scoped, tag = 'internal scratch']
  %s0 = inlined_call_operand.vmem [shape: f32[8,32], index: 0, kind: input, shape index: {}]
  %s1 = inlined_call_operand.vmem [shape: f32[8,1], index: 1, kind: input, shape index: {}]
  %s2 = inlined_call_operand.vmem [shape: f32[8,1], index: 2, kind: input, shape index: {}]
  %s3 = inlined_call_operand.vmem [shape: f32[8,24], index: 3, kind: input, shape index: {}]
  %s4 = inlined_call_operand.vmem [shape: f32[8,32], index: 4, kind: output, shape index: {0}]
  %s5 = inlined_call_operand.vmem [shape: f32[1,8,2], index: 5, kind: output, shape index: {1}]
  %6 = xla_tuple %s4, %s5
  %s7 = sld [smem:[#allocation0]]
  $region34: #{basic_block.4} parent=0
    _
  %s9 = ssub.s32 1, %s7
  %s10 = scalar_select 0, %s9, %s7
  // Predicated region
  $region2: #{basic_block.4} parent=0 // pred_check
    _
  $region3: #{basic_block.4} parent=0 // pred_check_branch
    %12 = sbr.rel (0) target = $region5
  $region4: #{basic_block.4} parent=0 // pred_region
    _
  $region5: #{basic_block.4} parent=0 // pred_fallthru
    _
  // Predicated region
  $region6: #{basic_block.4} parent=0 // pred_check
    _
  $region7: #{basic_block.4} parent=0 // pred_check_branch
    %14 = sbr.rel (0) target = $region9
  $region8: #{basic_block.4} parent=0 // pred_region
    _
  $region9: #{basic_block.4} parent=0 // pred_fallthru
    _
  // Predicated region
  $region10: #{basic_block.4} parent=0 // pred_check
    _
  $region11: #{basic_block.4} parent=0 // pred_check_branch
    %16 = sbr.rel (0) target = $region13
  $region12: #{basic_block.4} parent=0 // pred_region
    _
  $region13: #{basic_block.4} parent=0 // pred_fallthru
    _
  // Predicated region
  $region14: #{basic_block.4} parent=0 // pred_check
    _
  $region15: #{basic_block.4} parent=0 // pred_check_branch
    %18 = sbr.rel (0) target = $region17
  $region16: #{basic_block.4} parent=0 // pred_region
    _
  $region17: #{basic_block.4} parent=0 // pred_fallthru
    _
  %v19 = vld [vmem:[%s1] sm:$0xff]
  %v20 = vld [vmem:[%s0] sm:$0xff]
  %22 = vset.pattern.permute.xlu0 0
  %23 = vperm.xlu0 %22, %v19
  %v24 = vpop.permute.xlu0 %23
  %v26 = vmul.f32 %v24, %v20
  %v27 = vld [vmem:[%s2] sm:$0xff]
  %29 = vset.pattern.permute.xlu0 0
  %30 = vperm.xlu0 %29, %v27
  %v31 = vpop.permute.xlu0 %30
  %v33 = vadd.f32 %v26, %v31
  %v34 = vmax.f32 %v33, 0.0
  %v35 = vlaneseq
  %v36 = vand.u32 %v35, 127
  %vm37 = vcmp.lt.s32.totalorder %v36, 0
  %v38 = vsub.s32 0, %v36
  %v39 = vsel %vm37, %v38, %v36
  %v40 = vshrl.u32 %v39, 4
  %v41 = vand.u32 %v39, 15
  %v42 = vsub.s32 0, %v41
  %v43 = vsel %vm37, %v42, %v41
  %vm44 = vcmp.ne.s32.totalorder %v43, 0
  %vm45 = vcmp.lt.s32.totalorder %v43, 0
  %vm46 = vmand %vm45, %vm44
  %v47 = vadd.s32 %v43, 16
  %v48 = vsel %vm46, %v47, %v43
  %vm49 = vcmask 1047808
  %50 = vrot.lane.b32.xlu0 %v34, 32
  %v51 = vpop.permute.xlu0 %50
  %v52 = vsel %vm49, %v51, %v34
  %53 = vrot.lane.b32.xlu0 %v52, 32
  %v54 = vpop.permute.xlu0 %53
  %v55 = vsel %vm49, %v54, %v34
  %vm56 = vcmp.eq.s32.totalorder %v48, 0
  %58 = vrot.lane.b32.xlu0 %v55, 97
  %v59 = vpop.permute.xlu0 %58
  %v61 = vsel %vm56, 0.0, %v59
  %vm62 = vcmp.eq.s32.totalorder %v48, 15
  %63 = vrot.lane.b32.xlu0 %v55, 127
  %v64 = vpop.permute.xlu0 %63
  %v66 = vsel %vm62, 0.0, %v64
  %v67 = vld [vmem:[%s3] sm:$0xff]
  %vm68 = vcmask 195584
  %v70 = vsel %vm68, %v67, 0
  %72 = vmatprep.subr.mxu0 0.0
  %73 = vmatpush1.msra.mxu0 %v61
  %74 = vmatprep.subr.mxu0 0.0
  %75 = vmatpush1.msra.mxu0 %v34
  %76 = vmatprep.subr.mxu0 0.0
  %77 = vmatpush1.msra.mxu0 %v66
  %78 = vmatprep.subr.mxu0 0.0
  %79 = vmatpush1.msra.mxu0 0.0
  %80 = vmatprep.subr.mxu0 0.0
  %81 = vmatpush1.msra.mxu0 0.0
  %82 = vmatprep.subr.mxu0 0.0
  %83 = vmatpush1.msra.mxu0 0.0
  %84 = vmatprep.subr.mxu0 0.0
  %85 = vmatpush1.msra.mxu0 0.0
  %86 = vmatprep.subr.mxu0 0.0
  %87 = vmatpush1.msra.mxu0 0.0
  %88 = vmatprep.subr.mxu0 0.0
  %89 = vmatpush1.msra.mxu0 0.0
  %90 = vmatprep.subr.mxu0 0.0
  %91 = vmatpush1.msra.mxu0 0.0
  %92 = vmatprep.subr.mxu0 0.0
  %93 = vmatpush1.msra.mxu0 0.0
  %94 = vmatprep.subr.mxu0 0.0
  %95 = vmatpush1.msra.mxu0 0.0
  %96 = vmatprep.subr.mxu0 0.0
  %97 = vmatpush1.msra.mxu0 0.0
  %98 = vmatprep.subr.mxu0 0.0
  %99 = vmatpush1.msra.mxu0 0.0
  %100 = vmatprep.subr.mxu0 0.0
  %101 = vmatpush1.msra.mxu0 0.0
  %102 = vmatprep.subr.mxu0 0.0
  %103 = vmatpush1.msra.mxu0 0.0
  %104 = vmatprep.subr.mxu0 0.0
  %105 = vmatpush1.msra.mxu0 0.0
  %106 = vmatprep.subr.mxu0 0.0
  %107 = vmatpush1.msra.mxu0 0.0
  %108 = vmatprep.subr.mxu0 0.0
  %109 = vmatpush1.msra.mxu0 0.0
  %110 = vmatprep.subr.mxu0 0.0
  %111 = vmatpush1.msra.mxu0 0.0
  %112 = vmatprep.subr.mxu0 0.0
  %113 = vmatpush1.msra.mxu0 0.0
  %114 = vmatprep.subr.mxu0 0.0
  %115 = vmatpush1.msra.mxu0 0.0
  %116 = vmatprep.subr.mxu0 0.0
  %117 = vmatpush1.msra.mxu0 0.0
  %118 = vmatprep.subr.mxu0 0.0
  %119 = vmatpush1.msra.mxu0 0.0
  %120 = vmatprep.subr.mxu0 0.0
  %121 = vmatpush1.msra.mxu0 0.0
  %122 = vmatprep.subr.mxu0 0.0
  %123 = vmatpush1.msra.mxu0 0.0
  %124 = vmatprep.subr.mxu0 0.0
  %125 = vmatpush1.msra.mxu0 0.0
  %126 = vmatprep.subr.mxu0 0.0
  %127 = vmatpush1.msra.mxu0 0.0
  %128 = vmatprep.subr.mxu0 0.0
  %129 = vmatpush1.msra.mxu0 0.0
  %130 = vmatprep.subr.mxu0 0.0
  %131 = vmatpush1.msra.mxu0 0.0
  %132 = vmatprep.subr.mxu0 0.0
  %133 = vmatpush1.msra.mxu0 0.0
  %134 = vmatprep.subr.mxu0 0.0
  %135 = vmatpush1.msra.mxu0 0.0
  %136 = vmatprep.mubr.f32.mxu0 0.0
  %137 = vmatmul.mubr.f32.gmra.mrb[0].mxu0 %v70
  %v138 = vpop.f32.mrb[0].mxu0
  %v139 = vadd.f32 0.0, %v138
  %v140 = vpop.f32.mrb[0].mxu0
  %141 = vdwg.mxu0
  %vm142 = vcmask 261120
  %143 = vst.msk [vmem:[%s4] sm:$0xff] %vm142, %v139
  %v144 = vsel %vm142, %v139, 0.0
  %145 = vadd.xlane.f32.xlu0 %v144
  %v146 = vpop.xlane.xlu0 %145
  %v147 = vmul.f32 %v139, %v139
  %v148 = vsel %vm142, %v147, 0.0
  %149 = vadd.xlane.f32.xlu0 %v148
  %v150 = vpop.xlane.xlu0 %149
  %vm151 = vcmask 7168
  %v152 = vsel %vm151, %v146, %v150
  %vm153 = vcmask 15360
  %154 = vst.msk [vmem:[%s5] sm:$0xff] %vm153, %v152
  // Predicated region
  $region18: #{basic_block.4} parent=0 // pred_check
    _
  $region19: #{basic_block.4} parent=0 // pred_check_branch
    %156 = sbr.rel (0) target = $region21
  $region20: #{basic_block.4} parent=0 // pred_region
    _
  $region21: #{basic_block.4} parent=0 // pred_fallthru
    _
  // Predicated region
  $region22: #{basic_block.4} parent=0 // pred_check
    _
  $region23: #{basic_block.4} parent=0 // pred_check_branch
    %158 = sbr.rel (0) target = $region25
  $region24: #{basic_block.4} parent=0 // pred_region
    _
  $region25: #{basic_block.4} parent=0 // pred_fallthru
    _
  // Predicated region
  $region26: #{basic_block.4} parent=0 // pred_check
    _
  $region27: #{basic_block.4} parent=0 // pred_check_branch
    %160 = sbr.rel (0) target = $region29
  $region28: #{basic_block.4} parent=0 // pred_region
    _
  $region29: #{basic_block.4} parent=0 // pred_fallthru
    _
  // Predicated region
  $region30: #{basic_block.4} parent=0 // pred_check
    _
  $region31: #{basic_block.4} parent=0 // pred_check_branch
    %162 = sbr.rel (0) target = $region33
  $region32: #{basic_block.4} parent=0 // pred_region
    _
  $region33: #{basic_block.4} parent=0 // pred_fallthru
    _

</llo_original>
